<compile_context>
chip_gen: v6e
topology: v6e:2x2x1
jax: 0.10.0
libtpu: 0.0.40
codegen_flags: <defaults>
</compile_context>

<pallas_src>
import functools

import jax
import jax.numpy as jnp
from jax.experimental import pallas as pl
from jax.experimental.pallas import tpu as pltpu


# ---------------------------------------------------------------------------
# helpers
# ---------------------------------------------------------------------------
def _round_up(x, m):
    return ((x + m - 1) // m) * m


def _choose_tile(dim, cap):
    """Largest divisor of `dim` that is <= cap and a multiple of 8 (or dim itself)."""
    cap = max(8, min(dim, int(cap)))
    if dim <= cap:
        return dim
    for t in range(cap, 7, -1):
        if dim % t == 0 and t % 8 == 0:
            return t
    # TODO(synk): S has no 8-aligned divisor <= cap (odd/prime S); fall back to the
    # full dimension (correct, just a bigger block — guarded by the VMEM estimate).
    return dim


def _vmem_budget_bytes():
    """~75% of physical VMEM: ~48 MiB on v7x (64 MiB), ~96 MiB on v5e/v6e (128 MiB)."""
    vmem_cap = 64 * 1024 * 1024  # conservative default = v7x per-TC VMEM
    try:
        info = pltpu.get_tpu_info()
        cap = getattr(info, "vmem_capacity_bytes", None)
        if cap:
            vmem_cap = int(cap)
    except Exception:
        pass
    return int(vmem_cap * 0.75)


def _flash_tile_cap(budget, d_kp, d_vp, in_bytes, out_bytes):
    """Largest tq=tkv cap whose double-buffered tiles + scratch + temporaries fit."""
    for cap in (2048, 1024, 512, 256, 128):
        t = cap
        est = (2 * t * d_kp * in_bytes        # Q block (double-buffered)
               + 2 * t * d_kp * in_bytes      # K block
               + 2 * t * d_vp * in_bytes      # V block
               + 2 * t * d_vp * out_bytes     # output block
               + t * d_vp * 4 + 2 * t * 4     # acc + m/l scratch (f32)
               + 3 * t * t * 4)               # s / p / alpha f32 temporaries
        if est <= budget:
            return cap
    return 128


def _proj_tile_cap(budget, d_model, d_kp, d_vp, in_bytes):
    """Largest row-tile cap for the fused projection kernel."""
    weight_bytes = 2 * d_model * (2 * d_kp + d_vp) * in_bytes  # double-buffered weights
    avail = max(budget - weight_bytes, 1)
    for cap in (2048, 1024, 512, 256, 128, 64, 32, 16, 8):
        est = (6 * cap * d_model * in_bytes            # Q/K/V input tiles (x2 each)
               + 2 * cap * (2 * d_kp + d_vp) * in_bytes)  # projected output tiles (x2)
        if est <= avail:
            return cap
    return 8


# ---------------------------------------------------------------------------
# stage 1: fused Q/K/V projections (Q pre-scaled by 1/temperature)
# ---------------------------------------------------------------------------
def _project_kernel(xq_ref, xk_ref, xv_ref, wq_ref, wk_ref, wv_ref,
                    qp_ref, kp_ref, vp_ref, *, inv_temperature):
    dn = (((1,), (0,)), ((), ()))
    q = jax.lax.dot_general(xq_ref[...], wq_ref[...], dn,
                            preferred_element_type=jnp.float32)
    # Fold 1/temperature into Q once so stage 2 never scales the score tile.
    qp_ref[...] = (q * inv_temperature).astype(qp_ref.dtype)
    k = jax.lax.dot_general(xk_ref[...], wk_ref[...], dn,
                            preferred_element_type=jnp.float32)
    kp_ref[...] = k.astype(kp_ref.dtype)
    v = jax.lax.dot_general(xv_ref[...], wv_ref[...], dn,
                            preferred_element_type=jnp.float32)
    vp_ref[...] = v.astype(vp_ref.dtype)


def _project(Qc, Kc, Vc, Wq, Wk, Wv, *, inv_temperature, budget, mxu_dtype):
    B, S, d_model = Qc.shape
    d_kp = Wq.shape[1]
    d_vp = Wv.shape[1]
    in_bytes = jnp.dtype(mxu_dtype).itemsize

    ts = _choose_tile(S, _proj_tile_cap(budget, d_model, d_kp, d_vp, in_bytes))
    grid = (B, S // ts)

    kernel = functools.partial(_project_kernel,
                               inv_temperature=float(inv_temperature))

    x_spec = pl.BlockSpec((None, ts, d_model), lambda b, si: (b, si, 0))
    wq_spec = pl.BlockSpec((d_model, d_kp), lambda b, si: (0, 0))
    wk_spec = pl.BlockSpec((d_model, d_kp), lambda b, si: (0, 0))
    wv_spec = pl.BlockSpec((d_model, d_vp), lambda b, si: (0, 0))
    qp_spec = pl.BlockSpec((None, ts, d_kp), lambda b, si: (b, si, 0))
    kp_spec = pl.BlockSpec((None, ts, d_kp), lambda b, si: (b, si, 0))
    vp_spec = pl.BlockSpec((None, ts, d_vp), lambda b, si: (b, si, 0))

    flops = int(2 * B * S * d_model * (2 * d_kp + d_vp))
    bytes_accessed = int(3 * B * S * d_model * in_bytes
                         + B * S * (2 * d_kp + d_vp) * in_bytes
                         + d_model * (2 * d_kp + d_vp) * in_bytes)

    return pl.pallas_call(
        kernel,
        out_shape=(jax.ShapeDtypeStruct((B, S, d_kp), mxu_dtype),
                   jax.ShapeDtypeStruct((B, S, d_kp), mxu_dtype),
                   jax.ShapeDtypeStruct((B, S, d_vp), mxu_dtype)),
        grid_spec=pltpu.PrefetchScalarGridSpec(
            num_scalar_prefetch=0,
            grid=grid,
            in_specs=[x_spec, x_spec, x_spec, wq_spec, wk_spec, wv_spec],
            out_specs=[qp_spec, kp_spec, vp_spec]),
        compiler_params=pltpu.CompilerParams(
            dimension_semantics=("parallel", "parallel"),
            vmem_limit_bytes=budget),
        cost_estimate=pl.CostEstimate(flops=flops, transcendentals=0,
                                      bytes_accessed=bytes_accessed),
    )(Qc, Kc, Vc, Wq, Wk, Wv)


# ---------------------------------------------------------------------------
# stage 2: flash attention over pre-projected tensors
# ---------------------------------------------------------------------------
def _flash_kernel(q_ref, k_ref, v_ref, o_ref, m_sc, l_sc, acc_sc):
    # q_ref: (tq, d_kp), k_ref: (tkv, d_kp), v_ref: (tkv, d_vp), o_ref: (tq, d_vp)
    kv_idx = pl.program_id(2)

    @pl.when(kv_idx == 0)
    def _init():
        m_sc[...] = jnp.full_like(m_sc, -jnp.inf)
        l_sc[...] = jnp.zeros_like(l_sc)
        acc_sc[...] = jnp.zeros_like(acc_sc)

    # scores = q @ k^T (contract last dim of both operands: no XLU transpose).
    # Q is already pre-scaled by 1/temperature.
    s = jax.lax.dot_general(
        q_ref[...], k_ref[...],
        dimension_numbers=(((1,), (1,)), ((), ())),
        preferred_element_type=jnp.float32)                      # (tq, tkv)

    # Online softmax update in f32 (v5e VPU/EUP have no bf16 elementwise).
    m_prev = m_sc[...]
    m_new = jnp.maximum(m_prev, jnp.max(s, axis=-1, keepdims=True))
    alpha = jnp.exp(m_prev - m_new)
    p = jnp.exp(s - m_new)
    l_sc[...] = alpha * l_sc[...] + jnp.sum(p, axis=-1, keepdims=True)
    acc_sc[...] = alpha * acc_sc[...] + jax.lax.dot_general(
        p.astype(v_ref.dtype), v_ref[...],
        dimension_numbers=(((1,), (0,)), ((), ())),
        preferred_element_type=jnp.float32)
    m_sc[...] = m_new

    @pl.when(kv_idx == pl.num_programs(2) - 1)
    def _finalize():
        # Exact reciprocal for parity with the PyTorch softmax; cost is only a
        # (tq, 1) reciprocal + (tq, d_vp) multiply once per query tile.
        inv_l = pl.reciprocal(l_sc[...], approx=False)
        o_ref[...] = (acc_sc[...] * inv_l).astype(o_ref.dtype)


def _flash_attention(Qp, Kp, Vp, *, out_dtype, budget, mxu_dtype):
    B, S, d_kp = Qp.shape
    d_vp = Vp.shape[-1]
    in_bytes = jnp.dtype(mxu_dtype).itemsize
    out_bytes = jnp.dtype(out_dtype).itemsize

    cap = _flash_tile_cap(budget, d_kp, d_vp, in_bytes, out_bytes)
    tq = _choose_tile(S, cap)
    tkv = _choose_tile(S, cap)
    n_q = S // tq
    # Note: on v7x the two "parallel" axes (B, n_q) shard across the 2 TensorCores;
    # B * n_q >= 2 keeps both cores busy.
    grid = (B, n_q, S // tkv)

    q_spec = pl.BlockSpec((None, tq, d_kp), lambda b, qi, kv: (b, qi, 0))
    k_spec = pl.BlockSpec((None, tkv, d_kp), lambda b, qi, kv: (b, kv, 0))
    v_spec = pl.BlockSpec((None, tkv, d_vp), lambda b, qi, kv: (b, kv, 0))
    o_spec = pl.BlockSpec((None, tq, d_vp), lambda b, qi, kv: (b, qi, 0))

    flops = int(2 * B * S * S * (d_kp + d_vp))
    transcendentals = int(B * S * S)
    bytes_accessed = int(B * S * d_kp * in_bytes                     # Q read once
                         + B * S * (d_kp + d_vp) * in_bytes * n_q    # K,V per q tile
                         + B * S * d_vp * out_bytes)                 # output

    return pl.pallas_call(
        _flash_kernel,
        out_shape=jax.ShapeDtypeStruct((B, S, d_vp), out_dtype),
        grid_spec=pltpu.PrefetchScalarGridSpec(
            num_scalar_prefetch=0,
            grid=grid,
            in_specs=[q_spec, k_spec, v_spec],
            out_specs=o_spec,
            scratch_shapes=[
                pltpu.VMEM((tq, 1), jnp.float32),     # running max
                pltpu.VMEM((tq, 1), jnp.float32),     # running denom
                pltpu.VMEM((tq, d_vp), jnp.float32),  # output accumulator
            ]),
        compiler_params=pltpu.CompilerParams(
            dimension_semantics=("parallel", "parallel", "arbitrary"),
            vmem_limit_bytes=budget),
        cost_estimate=pl.CostEstimate(flops=flops,
                                      transcendentals=transcendentals,
                                      bytes_accessed=bytes_accessed),
    )(Qp, Kp, Vp)


# ---------------------------------------------------------------------------
# public wrapper (matches AttentionHead.forward with mask=None, eval mode)
# ---------------------------------------------------------------------------
def attention_head(Q, K, V, W_Q, W_K, W_V, *, temperature, mxu_dtype=jnp.bfloat16):
    B, S, d_model = Q.shape
    d_k = W_Q.shape[1]
    d_v = W_V.shape[1]
    out_dtype = Q.dtype

    # Pad head dims to the 128-lane width with zero weight columns:
    #   * zero Q/K columns contribute 0 to every score  -> softmax unchanged
    #   * zero V columns produce zero output columns    -> sliced off below
    # This keeps every matmul, VPU op and output store lane-dense (no vst.msk).
    d_kp = _round_up(d_k, 128)
    d_vp = _round_up(d_v, 128)

    def _pad_cols(w, target):
        pad = target - w.shape[1]
        if pad:
            w = jnp.pad(w, ((0, 0), (0, pad)))
        return w.astype(mxu_dtype)

    Wq = _pad_cols(W_Q, d_kp)
    Wk = _pad_cols(W_K, d_kp)
    Wv = _pad_cols(W_V, d_vp)

    # Cast activations to the MXU dtype at the call boundary (halves HBM DMA and
    # VMEM tile bytes on the bf16 path; no-op on the f32 reference path).
    Qc = Q.astype(mxu_dtype)
    Kc = K.astype(mxu_dtype)
    Vc = V.astype(mxu_dtype)

    budget = _vmem_budget_bytes()

    # Stage 1: project once (K@W_K / V@W_V are NOT recomputed per query tile, and
    # stage 2 streams narrow d_kp/d_vp tensors instead of d_model-wide K/V).
    Qp, Kp, Vp = _project(Qc, Kc, Vc, Wq, Wk, Wv,
                          inv_temperature=1.0 / float(temperature),
                          budget=budget, mxu_dtype=mxu_dtype)

    # Stage 2: flash attention over projected tensors.
    out_p = _flash_attention(Qp, Kp, Vp, out_dtype=out_dtype,
                             budget=budget, mxu_dtype=mxu_dtype)
    return out_p[..., :d_v]


def attention_head_ref(Q, K, V, W_Q, W_K, W_V, *, temperature):
    q = Q @ W_Q
    k = K @ W_K
    v = V @ W_V
    scores = jnp.einsum("bqd,bkd->bqk", q, k) / temperature
    attn = jax.nn.softmax(scores, axis=-1)
    return jnp.einsum("bqk,bkd->bqd", attn, v)


if __name__ == "__main__":
    # Small shapes consistent with the module.
    B, S, d_model, d_k, d_v = 2, 8, 32, 16, 16
    temperature = d_k ** 0.5

    key = jax.random.PRNGKey(0)
    kq, kk, kvv, kwq, kwk, kwv = jax.random.split(key, 6)

    Q = jax.random.normal(kq, (B, S, d_model), dtype=jnp.float32)
    K = jax.random.normal(kk, (B, S, d_model), dtype=jnp.float32)
    V = jax.random.normal(kvv, (B, S, d_model), dtype=jnp.float32)

    # Deterministic parameter init (stored as [d_model, d_out] = Linear.weight.T).
    W_Q = jax.random.normal(kwq, (d_model, d_k), dtype=jnp.float32) * (d_model ** -0.5)
    W_K = jax.random.normal(kwk, (d_model, d_k), dtype=jnp.float32) * (d_model ** -0.5)
    W_V = jax.random.normal(kwv, (d_model, d_v), dtype=jnp.float32) * (d_model ** -0.5)

    ref = attention_head_ref(Q, K, V, W_Q, W_K, W_V, temperature=temperature)

    # f32 MXU path: tight check of the two-stage flash/online-softmax structure.
    out_f32 = attention_head(Q, K, V, W_Q, W_K, W_V, temperature=temperature,
                             mxu_dtype=jnp.float32)
    out_f32 = jax.block_until_ready(out_f32)
    assert out_f32.shape == (B, S, d_v)
    assert jnp.allclose(out_f32, ref, atol=5e-3, rtol=5e-3)

    # bf16 MXU operands + f32 accumulation: the performance path (looser tolerance;
    # casting f32 inputs to bf16 before projection is a documented precision delta).
    out_bf16 = attention_head(Q, K, V, W_Q, W_K, W_V, temperature=temperature,
                              mxu_dtype=jnp.bfloat16)
    out_bf16 = jax.block_until_ready(out_bf16)
    assert out_bf16.shape == (B, S, d_v)
    assert jnp.allclose(out_bf16, ref, atol=3e-2, rtol=3e-2)

    print("KERNEL_OK")
</pallas_src>

<mosaic_0001>
module attributes {stable_mosaic.version = 11 : i64} {
  func.func @_project_kernel(%arg0: i32, %arg1: i32, %arg2: memref<1x8x32xf32, #tpu.memory_space<vmem>>, %arg3: memref<1x8x32xf32, #tpu.memory_space<vmem>>, %arg4: memref<1x8x32xf32, #tpu.memory_space<vmem>>, %arg5: memref<32x128xf32, #tpu.memory_space<vmem>>, %arg6: memref<32x128xf32, #tpu.memory_space<vmem>>, %arg7: memref<32x128xf32, #tpu.memory_space<vmem>>, %arg8: memref<1x8x128xf32, #tpu.memory_space<vmem>>, %arg9: memref<1x8x128xf32, #tpu.memory_space<vmem>>, %arg10: memref<1x8x128xf32, #tpu.memory_space<vmem>>) attributes {dimension_semantics = [#tpu.dimension_semantics<parallel>, #tpu.dimension_semantics<parallel>], iteration_bounds = array<i64: 2, 1>, scalar_prefetch = 0 : i64, scratch_operands = 0 : i64, tpu.core_type = #tpu.core_type<tc>, window_params = [{transform_indices = @transform_0, window_bounds = array<i64: 1, 8, 32>}, {transform_indices = @transform_1, window_bounds = array<i64: 1, 8, 32>}, {transform_indices = @transform_2, window_bounds = array<i64: 1, 8, 32>}, {pipeline_mode = #tpu.pipeline_mode<synchronous>, transform_indices = @transform_3, window_bounds = array<i64: 32, 128>}, {pipeline_mode = #tpu.pipeline_mode<synchronous>, transform_indices = @transform_4, window_bounds = array<i64: 32, 128>}, {pipeline_mode = #tpu.pipeline_mode<synchronous>, transform_indices = @transform_5, window_bounds = array<i64: 32, 128>}, {transform_indices = @transform_6, window_bounds = array<i64: 1, 8, 128>}, {transform_indices = @transform_7, window_bounds = array<i64: 1, 8, 128>}, {transform_indices = @transform_8, window_bounds = array<i64: 1, 8, 128>}]} {
    %c0 = arith.constant 0 : index
    %c0_0 = arith.constant 0 : index
    %c0_1 = arith.constant 0 : index
    %0 = vector.load %arg2[%c0, %c0_0, %c0_1] : memref<1x8x32xf32, #tpu.memory_space<vmem>>, vector<1x8x32xf32>
    %1 = vector.shape_cast %0 : vector<1x8x32xf32> to vector<8x32xf32>
    %c0_2 = arith.constant 0 : index
    %c0_3 = arith.constant 0 : index
    %2 = vector.load %arg5[%c0_2, %c0_3] : memref<32x128xf32, #tpu.memory_space<vmem>>, vector<32x128xf32>
    %cst = arith.constant dense<0.000000e+00> : vector<8x128xf32>
    %3 = tpu.matmul %1, %2, %cst {dimension_numbers = #tpu.dot_dimension_numbers<[1], [0], [0], [1], [0, 0, 1, 1], [], []>} : vector<8x32xf32>, vector<32x128xf32>, vector<8x128xf32> -> vector<8x128xf32>
    %cst_4 = arith.constant 2.500000e-01 : f32
    %4 = vector.broadcast %cst_4 : f32 to vector<8x128xf32>
    %5 = arith.mulf %3, %4 : vector<8x128xf32>
    %c0_5 = arith.constant 0 : index
    %c0_6 = arith.constant 0 : index
    %c0_7 = arith.constant 0 : index
    %6 = vector.load %arg8[%c0_5, %c0_6, %c0_7] : memref<1x8x128xf32, #tpu.memory_space<vmem>>, vector<1x8x128xf32>
    %7 = vector.shape_cast %6 : vector<1x8x128xf32> to vector<8x128xf32>
    %8 = vector.shape_cast %5 : vector<8x128xf32> to vector<1x8x128xf32>
    tpu.vector_store %arg8[%c0_5, %c0_6, %c0_7], %8 {strides = array<i32>} : memref<1x8x128xf32, #tpu.memory_space<vmem>>, vector<1x8x128xf32>,
    %c0_8 = arith.constant 0 : index
    %c0_9 = arith.constant 0 : index
    %c0_10 = arith.constant 0 : index
    %9 = vector.load %arg3[%c0_8, %c0_9, %c0_10] : memref<1x8x32xf32, #tpu.memory_space<vmem>>, vector<1x8x32xf32>
    %10 = vector.shape_cast %9 : vector<1x8x32xf32> to vector<8x32xf32>
    %c0_11 = arith.constant 0 : index
    %c0_12 = arith.constant 0 : index
    %11 = vector.load %arg6[%c0_11, %c0_12] : memref<32x128xf32, #tpu.memory_space<vmem>>, vector<32x128xf32>
    %cst_13 = arith.constant dense<0.000000e+00> : vector<8x128xf32>
    %12 = tpu.matmul %10, %11, %cst_13 {dimension_numbers = #tpu.dot_dimension_numbers<[1], [0], [0], [1], [0, 0, 1, 1], [], []>} : vector<8x32xf32>, vector<32x128xf32>, vector<8x128xf32> -> vector<8x128xf32>
    %c0_14 = arith.constant 0 : index
    %c0_15 = arith.constant 0 : index
    %c0_16 = arith.constant 0 : index
    %13 = vector.load %arg9[%c0_14, %c0_15, %c0_16] : memref<1x8x128xf32, #tpu.memory_space<vmem>>, vector<1x8x128xf32>
    %14 = vector.shape_cast %13 : vector<1x8x128xf32> to vector<8x128xf32>
    %15 = vector.shape_cast %12 : vector<8x128xf32> to vector<1x8x128xf32>
    tpu.vector_store %arg9[%c0_14, %c0_15, %c0_16], %15 {strides = array<i32>} : memref<1x8x128xf32, #tpu.memory_space<vmem>>, vector<1x8x128xf32>,
    %c0_17 = arith.constant 0 : index
    %c0_18 = arith.constant 0 : index
    %c0_19 = arith.constant 0 : index
    %16 = vector.load %arg4[%c0_17, %c0_18, %c0_19] : memref<1x8x32xf32, #tpu.memory_space<vmem>>, vector<1x8x32xf32>
    %17 = vector.shape_cast %16 : vector<1x8x32xf32> to vector<8x32xf32>
    %c0_20 = arith.constant 0 : index
    %c0_21 = arith.constant 0 : index
    %18 = vector.load %arg7[%c0_20, %c0_21] : memref<32x128xf32, #tpu.memory_space<vmem>>, vector<32x128xf32>
    %cst_22 = arith.constant dense<0.000000e+00> : vector<8x128xf32>
    %19 = tpu.matmul %17, %18, %cst_22 {dimension_numbers = #tpu.dot_dimension_numbers<[1], [0], [0], [1], [0, 0, 1, 1], [], []>} : vector<8x32xf32>, vector<32x128xf32>, vector<8x128xf32> -> vector<8x128xf32>
    %c0_23 = arith.constant 0 : index
    %c0_24 = arith.constant 0 : index
    %c0_25 = arith.constant 0 : index
    %20 = vector.load %arg10[%c0_23, %c0_24, %c0_25] : memref<1x8x128xf32, #tpu.memory_space<vmem>>, vector<1x8x128xf32>
    %21 = vector.shape_cast %20 : vector<1x8x128xf32> to vector<8x128xf32>
    %22 = vector.shape_cast %19 : vector<8x128xf32> to vector<1x8x128xf32>
    tpu.vector_store %arg10[%c0_23, %c0_24, %c0_25], %22 {strides = array<i32>} : memref<1x8x128xf32, #tpu.memory_space<vmem>>, vector<1x8x128xf32>,
    return
  }
  func.func @transform_0(%arg0: i32, %arg1: i32) -> (i32, i32, i32) {
    %c0_i32 = arith.constant 0 : i32
    %c0_i32_0 = arith.constant 0 : i32
    return %arg0, %arg1, %c0_i32 : i32, i32, i32
  }
  func.func @transform_1(%arg0: i32, %arg1: i32) -> (i32, i32, i32) {
    %c0_i32 = arith.constant 0 : i32
    %c0_i32_0 = arith.constant 0 : i32
    return %arg0, %arg1, %c0_i32 : i32, i32, i32
  }
  func.func @transform_2(%arg0: i32, %arg1: i32) -> (i32, i32, i32) {
    %c0_i32 = arith.constant 0 : i32
    %c0_i32_0 = arith.constant 0 : i32
    return %arg0, %arg1, %c0_i32 : i32, i32, i32
  }
  func.func @transform_3(%arg0: i32, %arg1: i32) -> (i32, i32) {
    %c0_i32 = arith.constant 0 : i32
    %c0_i32_0 = arith.constant 0 : i32
    %c0_i32_1 = arith.constant 0 : i32
    return %c0_i32, %c0_i32_0 : i32, i32
  }
  func.func @transform_4(%arg0: i32, %arg1: i32) -> (i32, i32) {
    %c0_i32 = arith.constant 0 : i32
    %c0_i32_0 = arith.constant 0 : i32
    %c0_i32_1 = arith.constant 0 : i32
    return %c0_i32, %c0_i32_0 : i32, i32
  }
  func.func @transform_5(%arg0: i32, %arg1: i32) -> (i32, i32) {
    %c0_i32 = arith.constant 0 : i32
    %c0_i32_0 = arith.constant 0 : i32
    %c0_i32_1 = arith.constant 0 : i32
    return %c0_i32, %c0_i32_0 : i32, i32
  }
  func.func @transform_6(%arg0: i32, %arg1: i32) -> (i32, i32, i32) {
    %c0_i32 = arith.constant 0 : i32
    %c0_i32_0 = arith.constant 0 : i32
    return %arg0, %arg1, %c0_i32 : i32, i32, i32
  }
  func.func @transform_7(%arg0: i32, %arg1: i32) -> (i32, i32, i32) {
    %c0_i32 = arith.constant 0 : i32
    %c0_i32_0 = arith.constant 0 : i32
    return %arg0, %arg1, %c0_i32 : i32, i32, i32
  }
  func.func @transform_8(%arg0: i32, %arg1: i32) -> (i32, i32, i32) {
    %c0_i32 = arith.constant 0 : i32
    %c0_i32_0 = arith.constant 0 : i32
    return %arg0, %arg1, %c0_i32 : i32, i32, i32
  }
}

</mosaic_0001>

<llo_original>
// kernel: tpu_custom_call.1
$region0: #{tpu_custom_call.1}
  #allocation0 [shape = 'u32[]', space=smem, size = 0x4, offset = 0x4, fixed_abs, tag = 'smem constant byte address 0x4 - core index']
  #allocation1 [shape = 'u32[144,128]{1,0:T(1,128)}', space=vmem, size = 0x12000, scoped, tag = 'internal scratch']
  %s0 = inlined_call_operand.hbm [shape: f32[2,8,32], index: 0, kind: input, shape index: {}]
  %s1 = inlined_call_operand.hbm [shape: f32[2,8,32], index: 1, kind: input, shape index: {}]
  %s2 = inlined_call_operand.hbm [shape: f32[2,8,32], index: 2, kind: input, shape index: {}]
  %s3 = inlined_call_operand.hbm [shape: f32[32,128], index: 3, kind: input, shape index: {}]
  %s4 = inlined_call_operand.hbm [shape: f32[32,128], index: 4, kind: input, shape index: {}]
  %s5 = inlined_call_operand.hbm [shape: f32[32,128], index: 5, kind: input, shape index: {}]
  %s6 = inlined_call_operand.hbm [shape: f32[2,8,128], index: 6, kind: output, shape index: {0}]
  %s7 = inlined_call_operand.hbm [shape: f32[2,8,128], index: 7, kind: output, shape index: {1}]
  %s8 = inlined_call_operand.hbm [shape: f32[2,8,128], index: 8, kind: output, shape index: {2}]
  %9 = xla_tuple %s6, %s7, %s8
  %s10 = sld [smem:[#allocation0]]
  $region97: #{tpu_custom_call.1} parent=0
    _
  %s12 = ssub.s32 1, %s10
  %s13 = scalar_select 0, %s12, %s10
  $region1: #{tpu_custom_call.1} parent=0
    #allocation2 [shape = 'u8[8192]{0}', space=vmem, size = 0x2000, scoped, tag = 'input window, operand 0']
    #allocation3 [shape = 's32[2]{0}', space=sflag, size = 0x8, scoped, tag = 'scoped memory for tpu_custom_call.1']
    #allocation4 [shape = 's32[2]{0}', space=sflag, size = 0x8, scoped, tag = 'scoped memory for tpu_custom_call.1']
    #allocation5 [shape = 'u8[8192]{0}', space=vmem, size = 0x2000, scoped, tag = 'input window, operand 1']
    #allocation6 [shape = 's32[2]{0}', space=sflag, size = 0x8, scoped, tag = 'scoped memory for tpu_custom_call.1']
    #allocation7 [shape = 'u8[8192]{0}', space=vmem, size = 0x2000, scoped, tag = 'input window, operand 2']
    #allocation8 [shape = 'u8[16384]{0}', space=vmem, size = 0x4000, scoped, tag = 'input window, operand 3, single buffered']
    #allocation9 [shape = 's32[1]{0}', space=sflag, size = 0x4, scoped, tag = 'scoped memory for tpu_custom_call.1']
    #allocation10 [shape = 'u8[16384]{0}', space=vmem, size = 0x4000, scoped, tag = 'input window, operand 4, single buffered']
    #allocation11 [shape = 'u8[16384]{0}', space=vmem, size = 0x4000, scoped, tag = 'input window, operand 5, single buffered']
    #allocation12 [shape = 's32[1]{0}', space=sflag, size = 0x4, scoped, tag = 'scoped memory for tpu_custom_call.1']
    #allocation13 [shape = 'u8[8192]{0}', space=vmem, size = 0x2000, scoped, tag = 'output window, operand 0']
    #allocation14 [shape = 'u8[8192]{0}', space=vmem, size = 0x2000, scoped, tag = 'output window, operand 1']
    #allocation15 [shape = 's32[2]{0}', space=sflag, size = 0x8, scoped, tag = 'scoped memory for tpu_custom_call.1']
    #allocation16 [shape = 'u8[8192]{0}', space=vmem, size = 0x2000, scoped, tag = 'output window, operand 2']
    %14 = vsyncpa [#allocation3], 0
    %s15 = scalar_lea.sflag [#allocation3], 1
    %16 = vsyncpa %s15, 0
    %17 = vsyncpa [#allocation6], 0
    %s18 = scalar_lea.sflag [#allocation6], 1
    %19 = vsyncpa %s18, 0
    %20 = vsyncpa [#allocation9], 0
    %21 = vsyncpa [#allocation12], 0
    %22 = vsyncpa [#allocation4], 0
    %s23 = scalar_lea.sflag [#allocation4], 1
    %24 = vsyncpa %s23, 0
    %25 = vsyncpa [#allocation15], 0
    %s26 = scalar_lea.sflag [#allocation15], 1
    %27 = vsyncpa %s26, 0
    loop: start=0, step=1, limit=4
    $region2: #{tpu_custom_call.1} parent=1 // loop_pre_header
      _
    $region3: #{tpu_custom_call.1} parent=1 // loop_header
      %s29 = sphi 0, %s33
      %p30 = scmp.ge.s32.totalorder %s29, 4
      %s36 = sphi 0, %s48
      %s37 = sphi 0, %s44
      %s38 = sphi 0, %s36
      %s39 = sphi 0, %s37
      %s40 = sphi 0, %s38
      %s41 = sphi 0, %s39
      %s53 = sphi 0, %s55
      %s56 = sphi 0, %s53
      %s57 = sphi 0, %s56
      %s73 = sphi 0, %s57
      %s81 = sphi 0, %s83
      %s84 = sphi 0, %s81
      %s85 = sphi 0, %s84
      %s101 = sphi 0, %s85
      %s109 = sphi 0, %s111
      %s112 = sphi 0, %s109
      %s113 = sphi 0, %s112
      %s129 = sphi 0, %s113
      %s133 = sphi 0, %s133
      %s135 = sphi 0, %s133
      %s136 = sphi 0, %s135
      %s150 = sphi 0, %s136
      %s154 = sphi 0, %s154
      %s156 = sphi 0, %s154
      %s157 = sphi 0, %s156
      %s171 = sphi 0, %s157
      %s175 = sphi 0, %s175
      %s177 = sphi 0, %s175
      %s178 = sphi 0, %s177
      %s192 = sphi 0, %s178
      %s200 = sphi 0, %s202
      %s203 = sphi 0, %s200
      %s204 = sphi 0, %s203
      %s220 = sphi 0, %s204
      %s228 = sphi 0, %s230
      %s231 = sphi 0, %s228
      %s232 = sphi 0, %s231
      %s248 = sphi 0, %s232
      %s256 = sphi 0, %s258
      %s259 = sphi 0, %s256
      %s260 = sphi 0, %s259
      %s276 = sphi 0, %s260
    $region4: #{tpu_custom_call.1} parent=1 // loop_header_branch
      %32 = sbr.rel (%p30) target = $region8
    $region5: #{tpu_custom_call.1} parent=1 // loop_body
      %s34 = ssub.s32 %s29, 1
      %s35 = ssub.s32 %s29, 2
      %s42 = sadd.s32 1, %s37
      %p43 = scmp.ge.s32.totalorder %s42, 1
      %s44 = scalar_select %p43, 0, %s42
      %s45 = sadd.s32 1, %s36
      %s46 = scalar_select %p43, %s45, %s36
      %p47 = scmp.ge.s32.totalorder %s46, 2
      %s48 = scalar_select %p47, 0, %s46
      %s49 = ssub.s32 %s36, %s48
      %s50 = ssub.s32 %s37, %s44
      %s51 = sor.u32 %s49, %s50
      %p52 = scmp.eq.s32.totalorder %s51, 0
      %s54 = sadd.s32 %s53, 1
      %s55 = scalar_select %p52, %s53, %s54
      %p58 = pneg %p52
      %p59 = scmp.eq.s32.totalorder %s29, 1
      %p60 = por %p58, %p59
      %p61 = scmp.ne.s32.totalorder %s53, %s56
      %p62 = scmp.eq.s32.totalorder %s29, 0
      %p63 = por %p61, %p62
      %p64 = scmp.ne.s32.totalorder %s53, %s56
      %p65 = scmp.eq.s32.totalorder %s34, 1
      %p66 = por %p64, %p65
      %p67 = scmp.ne.s32.totalorder %s56, %s57
      %p68 = scmp.eq.s32.totalorder %s34, 0
      %p69 = por %p67, %p68
      %p70 = scmp.ne.s32.totalorder %s56, %s57
      %p71 = scmp.eq.s32.totalorder %s35, 1
      %p72 = por %p70, %p71
      %p74 = scmp.ne.s32.totalorder %s57, %s73
      %p75 = scmp.eq.s32.totalorder %s35, 0
      %p76 = por %p74, %p75
      %s77 = ssub.s32 %s36, %s48
      %s78 = ssub.s32 %s37, %s44
      %s79 = sor.u32 %s77, %s78
      %p80 = scmp.eq.s32.totalorder %s79, 0
      %s82 = sadd.s32 %s81, 1
      %s83 = scalar_select %p80, %s81, %s82
      %p86 = pneg %p80
      %p87 = scmp.eq.s32.totalorder %s29, 1
      %p88 = por %p86, %p87
      %p89 = scmp.ne.s32.totalorder %s81, %s84
      %p90 = scmp.eq.s32.totalorder %s29, 0
      %p91 = por %p89, %p90
      %p92 = scmp.ne.s32.totalorder %s81, %s84
      %p93 = scmp.eq.s32.totalorder %s34, 1
      %p94 = por %p92, %p93
      %p95 = scmp.ne.s32.totalorder %s84, %s85
      %p96 = scmp.eq.s32.totalorder %s34, 0
      %p97 = por %p95, %p96
      %p98 = scmp.ne.s32.totalorder %s84, %s85
      %p99 = scmp.eq.s32.totalorder %s35, 1
      %p100 = por %p98, %p99
      %p102 = scmp.ne.s32.totalorder %s85, %s101
      %p103 = scmp.eq.s32.totalorder %s35, 0
      %p104 = por %p102, %p103
      %s105 = ssub.s32 %s36, %s48
      %s106 = ssub.s32 %s37, %s44
      %s107 = sor.u32 %s105, %s106
      %p108 = scmp.eq.s32.totalorder %s107, 0
      %s110 = sadd.s32 %s109, 1
      %s111 = scalar_select %p108, %s109, %s110
      %p114 = pneg %p108
      %p115 = scmp.eq.s32.totalorder %s29, 1
      %p116 = por %p114, %p115
      %p117 = scmp.ne.s32.totalorder %s109, %s112
      %p118 = scmp.eq.s32.totalorder %s29, 0
      %p119 = por %p117, %p118
      %p120 = scmp.ne.s32.totalorder %s109, %s112
      %p121 = scmp.eq.s32.totalorder %s34, 1
      %p122 = por %p120, %p121
      %p123 = scmp.ne.s32.totalorder %s112, %s113
      %p124 = scmp.eq.s32.totalorder %s34, 0
      %p125 = por %p123, %p124
      %p126 = scmp.ne.s32.totalorder %s112, %s113
      %p127 = scmp.eq.s32.totalorder %s35, 1
      %p128 = por %p126, %p127
      %p130 = scmp.ne.s32.totalorder %s113, %s129
      %p131 = scmp.eq.s32.totalorder %s35, 0
      %p132 = por %p130, %p131
      %s134 = sadd.s32 %s133, 1
      %p137 = scmp.eq.s32.totalorder %s29, 1
      %p138 = scmp.ne.s32.totalorder %s133, %s135
      %p139 = scmp.eq.s32.totalorder %s29, 0
      %p140 = por %p138, %p139
      %p141 = scmp.ne.s32.totalorder %s133, %s135
      %p142 = scmp.eq.s32.totalorder %s34, 1
      %p143 = por %p141, %p142
      %p144 = scmp.ne.s32.totalorder %s135, %s136
      %p145 = scmp.eq.s32.totalorder %s34, 0
      %p146 = por %p144, %p145
      %p147 = scmp.ne.s32.totalorder %s135, %s136
      %p148 = scmp.eq.s32.totalorder %s35, 1
      %p149 = por %p147, %p148
      %p151 = scmp.ne.s32.totalorder %s136, %s150
      %p152 = scmp.eq.s32.totalorder %s35, 0
      %p153 = por %p151, %p152
      %s155 = sadd.s32 %s154, 1
      %p158 = scmp.eq.s32.totalorder %s29, 1
      %p159 = scmp.ne.s32.totalorder %s154, %s156
      %p160 = scmp.eq.s32.totalorder %s29, 0
      %p161 = por %p159, %p160
      %p162 = scmp.ne.s32.totalorder %s154, %s156
      %p163 = scmp.eq.s32.totalorder %s34, 1
      %p164 = por %p162, %p163
      %p165 = scmp.ne.s32.totalorder %s156, %s157
      %p166 = scmp.eq.s32.totalorder %s34, 0
      %p167 = por %p165, %p166
      %p168 = scmp.ne.s32.totalorder %s156, %s157
      %p169 = scmp.eq.s32.totalorder %s35, 1
      %p170 = por %p168, %p169
      %p172 = scmp.ne.s32.totalorder %s157, %s171
      %p173 = scmp.eq.s32.totalorder %s35, 0
      %p174 = por %p172, %p173
      %s176 = sadd.s32 %s175, 1
      %p179 = scmp.eq.s32.totalorder %s29, 1
      %p180 = scmp.ne.s32.totalorder %s175, %s177
      %p181 = scmp.eq.s32.totalorder %s29, 0
      %p182 = por %p180, %p181
      %p183 = scmp.ne.s32.totalorder %s175, %s177
      %p184 = scmp.eq.s32.totalorder %s34, 1
      %p185 = por %p183, %p184
      %p186 = scmp.ne.s32.totalorder %s177, %s178
      %p187 = scmp.eq.s32.totalorder %s34, 0
      %p188 = por %p186, %p187
      %p189 = scmp.ne.s32.totalorder %s177, %s178
      %p190 = scmp.eq.s32.totalorder %s35, 1
      %p191 = por %p189, %p190
      %p193 = scmp.ne.s32.totalorder %s178, %s192
      %p194 = scmp.eq.s32.totalorder %s35, 0
      %p195 = por %p193, %p194
      %s196 = ssub.s32 %s36, %s48
      %s197 = ssub.s32 %s37, %s44
      %s198 = sor.u32 %s196, %s197
      %p199 = scmp.eq.s32.totalorder %s198, 0
      %s201 = sadd.s32 %s200, 1
      %s202 = scalar_select %p199, %s200, %s201
      %p205 = pneg %p199
      %p206 = scmp.eq.s32.totalorder %s29, 1
      %p207 = por %p205, %p206
      %p208 = scmp.ne.s32.totalorder %s200, %s203
      %p209 = scmp.eq.s32.totalorder %s29, 0
      %p210 = por %p208, %p209
      %p211 = scmp.ne.s32.totalorder %s200, %s203
      %p212 = scmp.eq.s32.totalorder %s34, 1
      %p213 = por %p211, %p212
      %p214 = scmp.ne.s32.totalorder %s203, %s204
      %p215 = scmp.eq.s32.totalorder %s34, 0
      %p216 = por %p214, %p215
      %p217 = scmp.ne.s32.totalorder %s203, %s204
      %p218 = scmp.eq.s32.totalorder %s35, 1
      %p219 = por %p217, %p218
      %p221 = scmp.ne.s32.totalorder %s204, %s220
      %p222 = scmp.eq.s32.totalorder %s35, 0
      %p223 = por %p221, %p222
      %s224 = ssub.s32 %s36, %s48
      %s225 = ssub.s32 %s37, %s44
      %s226 = sor.u32 %s224, %s225
      %p227 = scmp.eq.s32.totalorder %s226, 0
      %s229 = sadd.s32 %s228, 1
      %s230 = scalar_select %p227, %s228, %s229
      %p233 = pneg %p227
      %p234 = scmp.eq.s32.totalorder %s29, 1
      %p235 = por %p233, %p234
      %p236 = scmp.ne.s32.totalorder %s228, %s231
      %p237 = scmp.eq.s32.totalorder %s29, 0
      %p238 = por %p236, %p237
      %p239 = scmp.ne.s32.totalorder %s228, %s231
      %p240 = scmp.eq.s32.totalorder %s34, 1
      %p241 = por %p239, %p240
      %p242 = scmp.ne.s32.totalorder %s231, %s232
      %p243 = scmp.eq.s32.totalorder %s34, 0
      %p244 = por %p242, %p243
      %p245 = scmp.ne.s32.totalorder %s231, %s232
      %p246 = scmp.eq.s32.totalorder %s35, 1
      %p247 = por %p245, %p246
      %p249 = scmp.ne.s32.totalorder %s232, %s248
      %p250 = scmp.eq.s32.totalorder %s35, 0
      %p251 = por %p249, %p250
      %s252 = ssub.s32 %s36, %s48
      %s253 = ssub.s32 %s37, %s44
      %s254 = sor.u32 %s252, %s253
      %p255 = scmp.eq.s32.totalorder %s254, 0
      %s257 = sadd.s32 %s256, 1
      %s258 = scalar_select %p255, %s256, %s257
      %p261 = pneg %p255
      %p262 = scmp.eq.s32.totalorder %s29, 1
      %p263 = por %p261, %p262
      %p264 = scmp.ne.s32.totalorder %s256, %s259
      %p265 = scmp.eq.s32.totalorder %s29, 0
      %p266 = por %p264, %p265
      %p267 = scmp.ne.s32.totalorder %s256, %s259
      %p268 = scmp.eq.s32.totalorder %s34, 1
      %p269 = por %p267, %p268
      %p270 = scmp.ne.s32.totalorder %s259, %s260
      %p271 = scmp.eq.s32.totalorder %s34, 0
      %p272 = por %p270, %p271
      %p273 = scmp.ne.s32.totalorder %s259, %s260
      %p274 = scmp.eq.s32.totalorder %s35, 1
      %p275 = por %p273, %p274
      %p277 = scmp.ne.s32.totalorder %s260, %s276
      %p278 = scmp.eq.s32.totalorder %s35, 0
      %p279 = por %p277, %p278
      %p280 = scmp.le.s32.totalorder 1, %s29
      %p281 = scmp.lt.s32.totalorder %s29, 3
      %p282 = pnand %p280, %p281
      %p283 = pneg %p282
      // Predicated region
      $region9: #{tpu_custom_call.1} parent=5 // pred_check
        _
      $region10: #{tpu_custom_call.1} parent=5 // pred_check_branch
        %285 = sbr.rel (%p282) target = $region12
      $region11: #{tpu_custom_call.1} parent=5 // pred_region
        %s286 = ssub.s32 %s29, 1
        // Predicated region
        $region13: #{tpu_custom_call.1} parent=11 // pred_check
          %p287 = pneg %p146
        $region14: #{tpu_custom_call.1} parent=11 // pred_check_branch
          %289 = sbr.rel (%p287) target = $region16
        $region15: #{tpu_custom_call.1} parent=11 // pred_region
          %s291 = ssub.s32 512, 512
          %292 = vsyncadd [#allocation9], %s291
          %s293 = sshll.u32 [#allocation8], 4
          %s294 = int_to_ptr.vmem [resolvable:$true] %s293
          %299 = dma.hbm_to_vmem [thread:$0]  %s3, 512, %s294, [#allocation9], 128, 128, 8
        $region16: #{tpu_custom_call.1} parent=11 // pred_fallthru
          _
        // Predicated region
        $region17: #{tpu_custom_call.1} parent=11 // pred_check
          %p300 = pneg %p167
        $region18: #{tpu_custom_call.1} parent=11 // pred_check_branch
          %302 = sbr.rel (%p300) target = $region20
        $region19: #{tpu_custom_call.1} parent=11 // pred_region
          %s304 = ssub.s32 512, 512
          %305 = vsyncadd [#allocation9], %s304
          %s306 = sshll.u32 [#allocation10], 4
          %s307 = int_to_ptr.vmem [resolvable:$true] %s306
          %312 = dma.hbm_to_vmem [thread:$0]  %s4, 512, %s307, [#allocation9], 128, 128, 8
        $region20: #{tpu_custom_call.1} parent=11 // pred_fallthru
          _
        // Predicated region
        $region21: #{tpu_custom_call.1} parent=11 // pred_check
          %p313 = pneg %p188
        $region22: #{tpu_custom_call.1} parent=11 // pred_check_branch
          %315 = sbr.rel (%p313) target = $region24
        $region23: #{tpu_custom_call.1} parent=11 // pred_region
          %s317 = ssub.s32 512, 512
          %318 = vsyncadd [#allocation12], %s317
          %s319 = sshll.u32 [#allocation11], 4
          %s320 = int_to_ptr.vmem [resolvable:$true] %s319
          %325 = dma.hbm_to_vmem [thread:$0]  %s5, 512, %s320, [#allocation12], 128, 128, 8
        $region24: #{tpu_custom_call.1} parent=11 // pred_fallthru
          _
      $region12: #{tpu_custom_call.1} parent=5 // pred_fallthru
        _
      %p326 = scmp.lt.s32.totalorder %s29, 2
      // Predicated region
      $region25: #{tpu_custom_call.1} parent=5 // pred_check
        %p327 = pneg %p326
      $region26: #{tpu_custom_call.1} parent=5 // pred_check_branch
        %329 = sbr.rel (%p327) target = $region28
      $region27: #{tpu_custom_call.1} parent=5 // pred_region
        // Predicated region
        $region29: #{tpu_custom_call.1} parent=27 // pred_check
          %p330 = pneg %p63
        $region30: #{tpu_custom_call.1} parent=27 // pred_check_branch
          %332 = sbr.rel (%p330) target = $region32
        $region31: #{tpu_custom_call.1} parent=27 // pred_region
          %s333 = sand.u32 %s53, 1
          %s334 = scalar_lea.sflag [#allocation3], %s333
          %s335 = sand.u32 %s53, 1
          %s336 = smul.addr %s335, 8
          %s337 = scalar_lea.vmem [#allocation2], %s336
          %s339 = ssub.s32 128, 128
          %340 = vsyncadd %s334, %s339
          %s341 = sadd.s32 %s37, %s36
          %s342 = smul.addr %s341, 128
          %s343 = scalar_lea.hbm %s0, %s342
          %s345 = sshll.u32 %s337, 4
          %s346 = int_to_ptr.vmem [resolvable:$true] %s345
          %348 = dma.hbm_to_vmem [thread:$0]  %s343, 128, %s346, %s334
        $region32: #{tpu_custom_call.1} parent=27 // pred_fallthru
          _
        // Predicated region
        $region33: #{tpu_custom_call.1} parent=27 // pred_check
          %p349 = pneg %p91
        $region34: #{tpu_custom_call.1} parent=27 // pred_check_branch
          %351 = sbr.rel (%p349) target = $region36
        $region35: #{tpu_custom_call.1} parent=27 // pred_region
          %s352 = sand.u32 %s29, 1
          %s353 = scalar_lea.sflag [#allocation6], %s352
          %s354 = sand.u32 %s81, 1
          %s355 = smul.addr %s354, 8
          %s356 = scalar_lea.vmem [#allocation5], %s355
          %s358 = ssub.s32 128, 128
          %359 = vsyncadd %s353, %s358
          %s360 = sadd.s32 %s37, %s36
          %s361 = smul.addr %s360, 128
          %s362 = scalar_lea.hbm %s1, %s361
          %s364 = sshll.u32 %s356, 4
          %s365 = int_to_ptr.vmem [resolvable:$true] %s364
          %367 = dma.hbm_to_vmem [thread:$0]  %s362, 128, %s365, %s353
        $region36: #{tpu_custom_call.1} parent=27 // pred_fallthru
          _
        // Predicated region
        $region37: #{tpu_custom_call.1} parent=27 // pred_check
          %p368 = pneg %p119
        $region38: #{tpu_custom_call.1} parent=27 // pred_check_branch
          %370 = sbr.rel (%p368) target = $region40
        $region39: #{tpu_custom_call.1} parent=27 // pred_region
          %s371 = sand.u32 %s29, 1
          %s372 = scalar_lea.sflag [#allocation6], %s371
          %s373 = sand.u32 %s109, 1
          %s374 = smul.addr %s373, 8
          %s375 = scalar_lea.vmem [#allocation7], %s374
          %s377 = ssub.s32 128, 128
          %378 = vsyncadd %s372, %s377
          %s379 = sadd.s32 %s37, %s36
          %s380 = smul.addr %s379, 128
          %s381 = scalar_lea.hbm %s2, %s380
          %s383 = sshll.u32 %s375, 4
          %s384 = int_to_ptr.vmem [resolvable:$true] %s383
          %386 = dma.hbm_to_vmem [thread:$0]  %s381, 128, %s384, %s372
        $region40: #{tpu_custom_call.1} parent=27 // pred_fallthru
          _
      $region28: #{tpu_custom_call.1} parent=5 // pred_fallthru
        _
      %p387 = scmp.le.s32.totalorder 1, %s29
      %p388 = scmp.lt.s32.totalorder %s29, 3
      %p389 = pnand %p387, %p388
      %p390 = pneg %p389
      // Predicated region
      $region41: #{tpu_custom_call.1} parent=5 // pred_check
        _
      $region42: #{tpu_custom_call.1} parent=5 // pred_check_branch
        %392 = sbr.rel (%p389) target = $region44
      $region43: #{tpu_custom_call.1} parent=5 // pred_region
        %s393 = ssub.s32 %s29, 1
        %s394 = sand.u32 %s56, 1
        %s395 = scalar_lea.sflag [#allocation3], %s394
        %s396 = sand.u32 %s56, 1
        %s397 = smul.addr %s396, 8
        %s398 = scalar_lea.vmem [#allocation2], %s397
        // Predicated region
        $region45: #{tpu_custom_call.1} parent=43 // pred_check
          %p399 = pneg %p69
        $region46: #{tpu_custom_call.1} parent=43 // pred_check_branch
          %401 = sbr.rel (%p399) target = $region48
        $region47: #{tpu_custom_call.1} parent=43 // pred_region
          %402 = dma.done %s395, 128
        $region48: #{tpu_custom_call.1} parent=43 // pred_fallthru
          _
        %s403 = sand.u32 %s34, 1
        %s404 = scalar_lea.sflag [#allocation6], %s403
        %s405 = sand.u32 %s84, 1
        %s406 = smul.addr %s405, 8
        %s407 = scalar_lea.vmem [#allocation5], %s406
        // Predicated region
        $region49: #{tpu_custom_call.1} parent=43 // pred_check
          %p408 = pneg %p97
        $region50: #{tpu_custom_call.1} parent=43 // pred_check_branch
          %410 = sbr.rel (%p408) target = $region52
        $region51: #{tpu_custom_call.1} parent=43 // pred_region
          %411 = dma.done %s404, 128
        $region52: #{tpu_custom_call.1} parent=43 // pred_fallthru
          _
        %s412 = sand.u32 %s34, 1
        %s413 = scalar_lea.sflag [#allocation6], %s412
        %s414 = sand.u32 %s112, 1
        %s415 = smul.addr %s414, 8
        %s416 = scalar_lea.vmem [#allocation7], %s415
        // Predicated region
        $region53: #{tpu_custom_call.1} parent=43 // pred_check
          %p417 = pneg %p125
        $region54: #{tpu_custom_call.1} parent=43 // pred_check_branch
          %419 = sbr.rel (%p417) target = $region56
        $region55: #{tpu_custom_call.1} parent=43 // pred_region
          %420 = dma.done %s413, 128
        $region56: #{tpu_custom_call.1} parent=43 // pred_fallthru
          _
        // Predicated region
        $region57: #{tpu_custom_call.1} parent=43 // pred_check
          %p421 = pneg %p146
        $region58: #{tpu_custom_call.1} parent=43 // pred_check_branch
          %423 = sbr.rel (%p421) target = $region60
        $region59: #{tpu_custom_call.1} parent=43 // pred_region
          %424 = dma.done [#allocation9], 512
        $region60: #{tpu_custom_call.1} parent=43 // pred_fallthru
          _
        // Predicated region
        $region61: #{tpu_custom_call.1} parent=43 // pred_check
          %p425 = pneg %p167
        $region62: #{tpu_custom_call.1} parent=43 // pred_check_branch
          %427 = sbr.rel (%p425) target = $region64
        $region63: #{tpu_custom_call.1} parent=43 // pred_region
          %428 = dma.done [#allocation9], 512
        $region64: #{tpu_custom_call.1} parent=43 // pred_fallthru
          _
        // Predicated region
        $region65: #{tpu_custom_call.1} parent=43 // pred_check
          %p429 = pneg %p188
        $region66: #{tpu_custom_call.1} parent=43 // pred_check_branch
          %431 = sbr.rel (%p429) target = $region68
        $region67: #{tpu_custom_call.1} parent=43 // pred_region
          %432 = dma.done [#allocation12], 512
        $region68: #{tpu_custom_call.1} parent=43 // pred_fallthru
          _
        %s433 = sand.u32 %s56, 1
        %s434 = scalar_lea.sflag [#allocation3], %s433
        %s435 = sand.u32 %s56, 1
        %s436 = smul.addr %s435, 8
        %s437 = scalar_lea.vmem [#allocation2], %s436
        %p438 = pneg %p69
        %p439 = pneg %p66
        %s440 = sand.u32 %s34, 1
        %s441 = scalar_lea.sflag [#allocation6], %s440
        %s442 = sand.u32 %s84, 1
        %s443 = smul.addr %s442, 8
        %s444 = scalar_lea.vmem [#allocation5], %s443
        %p445 = pneg %p97
        %p446 = pneg %p94
        %s447 = sand.u32 %s34, 1
        %s448 = scalar_lea.sflag [#allocation6], %s447
        %s449 = sand.u32 %s112, 1
        %s450 = smul.addr %s449, 8
        %s451 = scalar_lea.vmem [#allocation7], %s450
        %p452 = pneg %p125
        %p453 = pneg %p122
        %p454 = pneg %p146
        %p455 = pneg %p143
        %p456 = pneg %p167
        %p457 = pneg %p164
        %p458 = pneg %p188
        %p459 = pneg %p185
        %p460 = pneg %p216
        %p461 = pneg %p213
        %s462 = sand.u32 %s203, 1
        %s463 = scalar_lea.sflag [#allocation4], %s462
        %s464 = sand.u32 %s203, 1
        %s465 = smul.addr %s464, 8
        %s466 = scalar_lea.vmem [#allocation13], %s465
        %p467 = pneg %p244
        %p468 = pneg %p241
        %s469 = sand.u32 %s34, 1
        %s470 = scalar_lea.sflag [#allocation15], %s469
        %s471 = sand.u32 %s231, 1
        %s472 = smul.addr %s471, 8
        %s473 = scalar_lea.vmem [#allocation14], %s472
        %p474 = pneg %p272
        %p475 = pneg %p269
        %s476 = sand.u32 %s34, 1
        %s477 = scalar_lea.sflag [#allocation15], %s476
        %s478 = sand.u32 %s259, 1
        %s479 = smul.addr %s478, 8
        %s480 = scalar_lea.vmem [#allocation16], %s479
        %v481 = vld [vmem:[%s398] sm:$0xff]
        %v482 = vld [vmem:[#allocation8] sm:$0xff]
        %v483 = vld [vmem:[#allocation8 + $0x8] sm:$0xff]
        %v484 = vld [vmem:[#allocation8 + $0x10] sm:$0xff]
        %v485 = vld [vmem:[#allocation8 + $0x18] sm:$0xff]
        %vm486 = vcmask 261120
        %v488 = vsel %vm486, %v481, 0
        %490 = vmatprep.subr.mxu0 0.0
        %491 = vmatpush1.msra.mxu0 0.0
        %492 = vmatprep.subr.mxu0 0.0
        %493 = vmatpush1.msra.mxu0 0.0
        %494 = vmatprep.subr.mxu0 0.0
        %495 = vmatpush1.msra.mxu0 0.0
        %496 = vmatprep.subr.mxu0 0.0
        %497 = vmatpush1.msra.mxu0 0.0
        %498 = vmatprep.subr.mxu0 0.0
        %499 = vmatpush1.msra.mxu0 0.0
        %500 = vmatprep.subr.mxu0 0.0
        %501 = vmatpush1.msra.mxu0 0.0
        %502 = vmatprep.subr.mxu0 0.0
        %503 = vmatpush1.msra.mxu0 0.0
        %504 = vmatprep.subr.mxu0 0.0
        %505 = vmatpush1.msra.mxu0 0.0
        %506 = vmatprep.subr.mxu0 0.0
        %507 = vmatpush1.msra.mxu0 0.0
        %508 = vmatprep.subr.mxu0 0.0
        %509 = vmatpush1.msra.mxu0 0.0
        %510 = vmatprep.subr.mxu0 0.0
        %511 = vmatpush1.msra.mxu0 0.0
        %512 = vmatprep.subr.mxu0 0.0
        %513 = vmatpush1.msra.mxu0 0.0
        %514 = vmatprep.subr.mxu0 0.0
        %515 = vmatpush1.msra.mxu0 %v485
        %516 = vmatprep.subr.mxu0 0.0
        %517 = vmatpush1.msra.mxu0 %v484
        %518 = vmatprep.subr.mxu0 0.0
        %519 = vmatpush1.msra.mxu0 %v483
        %520 = vmatprep.subr.mxu0 0.0
        %521 = vmatpush1.msra.mxu0 %v482
        %522 = vmatprep.subr.mxu0 0.0
        %523 = vmatpush2.msra.mxu0 0.0
        %524 = vmatprep.subr.mxu0 0.0
        %525 = vmatpush2.msra.mxu0 0.0
        %526 = vmatprep.subr.mxu0 0.0
        %527 = vmatpush2.msra.mxu0 0.0
        %528 = vmatprep.subr.mxu0 0.0
        %529 = vmatpush2.msra.mxu0 0.0
        %530 = vmatprep.subr.mxu0 0.0
        %531 = vmatpush2.msra.mxu0 0.0
        %532 = vmatprep.subr.mxu0 0.0
        %533 = vmatpush2.msra.mxu0 0.0
        %534 = vmatprep.subr.mxu0 0.0
        %535 = vmatpush2.msra.mxu0 0.0
        %536 = vmatprep.subr.mxu0 0.0
        %537 = vmatpush2.msra.mxu0 0.0
        %538 = vmatprep.subr.mxu0 0.0
        %539 = vmatpush2.msra.mxu0 0.0
        %540 = vmatprep.subr.mxu0 0.0
        %541 = vmatpush2.msra.mxu0 0.0
        %542 = vmatprep.subr.mxu0 0.0
        %543 = vmatpush2.msra.mxu0 0.0
        %544 = vmatprep.subr.mxu0 0.0
        %545 = vmatpush2.msra.mxu0 0.0
        %546 = vmatprep.subr.mxu0 0.0
        %547 = vmatpush2.msra.mxu0 0.0
        %548 = vmatprep.subr.mxu0 0.0
        %549 = vmatpush2.msra.mxu0 0.0
        %550 = vmatprep.subr.mxu0 0.0
        %551 = vmatpush2.msra.mxu0 0.0
        %552 = vmatprep.subr.mxu0 0.0
        %553 = vmatpush2.msra.mxu0 0.0
        %554 = vmatprep.mubr.f32.mxu0 0.0
        %555 = vmatmul.mubr.f32.gmra.mxu0 %v488
        %v556 = vpop.f32.mrf.mxu0
        %v557 = vadd.f32 0.0, %v556
        %v558 = vpop.f32.mrf.mxu0
        %559 = vdwg.mxu0
        %v560 = vmul.f32 %v557, 0.25
        %561 = vst [vmem:[%s466] sm:$0xff] %v560
        %v562 = vld [vmem:[%s407] sm:$0xff]
        %v563 = vld [vmem:[#allocation10] sm:$0xff]
        %v564 = vld [vmem:[#allocation10 + $0x8] sm:$0xff]
        %v565 = vld [vmem:[#allocation10 + $0x10] sm:$0xff]
        %v566 = vld [vmem:[#allocation10 + $0x18] sm:$0xff]
        %v568 = vsel %vm486, %v562, 0
        %570 = vmatprep.subr.mxu0 0.0
        %571 = vmatpush1.msra.mxu0 0.0
        %572 = vmatprep.subr.mxu0 0.0
        %573 = vmatpush1.msra.mxu0 0.0
        %574 = vmatprep.subr.mxu0 0.0
        %575 = vmatpush1.msra.mxu0 0.0
        %576 = vmatprep.subr.mxu0 0.0
        %577 = vmatpush1.msra.mxu0 0.0
        %578 = vmatprep.subr.mxu0 0.0
        %579 = vmatpush1.msra.mxu0 0.0
        %580 = vmatprep.subr.mxu0 0.0
        %581 = vmatpush1.msra.mxu0 0.0
        %582 = vmatprep.subr.mxu0 0.0
        %583 = vmatpush1.msra.mxu0 0.0
        %584 = vmatprep.subr.mxu0 0.0
        %585 = vmatpush1.msra.mxu0 0.0
        %586 = vmatprep.subr.mxu0 0.0
        %587 = vmatpush1.msra.mxu0 0.0
        %588 = vmatprep.subr.mxu0 0.0
        %589 = vmatpush1.msra.mxu0 0.0
        %590 = vmatprep.subr.mxu0 0.0
        %591 = vmatpush1.msra.mxu0 0.0
        %592 = vmatprep.subr.mxu0 0.0
        %593 = vmatpush1.msra.mxu0 0.0
        %594 = vmatprep.subr.mxu0 0.0
        %595 = vmatpush1.msra.mxu0 %v566
        %596 = vmatprep.subr.mxu0 0.0
        %597 = vmatpush1.msra.mxu0 %v565
        %598 = vmatprep.subr.mxu0 0.0
        %599 = vmatpush1.msra.mxu0 %v564
        %600 = vmatprep.subr.mxu0 0.0
        %601 = vmatpush1.msra.mxu0 %v563
        %602 = vmatprep.subr.mxu0 0.0
        %603 = vmatpush2.msra.mxu0 0.0
        %604 = vmatprep.subr.mxu0 0.0
        %605 = vmatpush2.msra.mxu0 0.0
        %606 = vmatprep.subr.mxu0 0.0
        %607 = vmatpush2.msra.mxu0 0.0
        %608 = vmatprep.subr.mxu0 0.0
        %609 = vmatpush2.msra.mxu0 0.0
        %610 = vmatprep.subr.mxu0 0.0
        %611 = vmatpush2.msra.mxu0 0.0
        %612 = vmatprep.subr.mxu0 0.0
        %613 = vmatpush2.msra.mxu0 0.0
        %614 = vmatprep.subr.mxu0 0.0
        %615 = vmatpush2.msra.mxu0 0.0
        %616 = vmatprep.subr.mxu0 0.0
        %617 = vmatpush2.msra.mxu0 0.0
        %618 = vmatprep.subr.mxu0 0.0
        %619 = vmatpush2.msra.mxu0 0.0
        %620 = vmatprep.subr.mxu0 0.0
        %621 = vmatpush2.msra.mxu0 0.0
        %622 = vmatprep.subr.mxu0 0.0
        %623 = vmatpush2.msra.mxu0 0.0
        %624 = vmatprep.subr.mxu0 0.0
        %625 = vmatpush2.msra.mxu0 0.0
        %626 = vmatprep.subr.mxu0 0.0
        %627 = vmatpush2.msra.mxu0 0.0
        %628 = vmatprep.subr.mxu0 0.0
        %629 = vmatpush2.msra.mxu0 0.0
        %630 = vmatprep.subr.mxu0 0.0
        %631 = vmatpush2.msra.mxu0 0.0
        %632 = vmatprep.subr.mxu0 0.0
        %633 = vmatpush2.msra.mxu0 0.0
        %634 = vmatprep.mubr.f32.mxu0 0.0
        %635 = vmatmul.mubr.f32.gmra.mxu0 %v568
        %v636 = vpop.f32.mrf.mxu0
        %v637 = vadd.f32 0.0, %v636
        %v638 = vpop.f32.mrf.mxu0
        %639 = vdwg.mxu0
        %640 = vst [vmem:[%s473] sm:$0xff] %v637
        %v641 = vld [vmem:[%s416] sm:$0xff]
        %v642 = vld [vmem:[#allocation11] sm:$0xff]
        %v643 = vld [vmem:[#allocation11 + $0x8] sm:$0xff]
        %v644 = vld [vmem:[#allocation11 + $0x10] sm:$0xff]
        %v645 = vld [vmem:[#allocation11 + $0x18] sm:$0xff]
        %v647 = vsel %vm486, %v641, 0
        %649 = vmatprep.subr.mxu0 0.0
        %650 = vmatpush1.msra.mxu0 0.0
        %651 = vmatprep.subr.mxu0 0.0
        %652 = vmatpush1.msra.mxu0 0.0
        %653 = vmatprep.subr.mxu0 0.0
        %654 = vmatpush1.msra.mxu0 0.0
        %655 = vmatprep.subr.mxu0 0.0
        %656 = vmatpush1.msra.mxu0 0.0
        %657 = vmatprep.subr.mxu0 0.0
        %658 = vmatpush1.msra.mxu0 0.0
        %659 = vmatprep.subr.mxu0 0.0
        %660 = vmatpush1.msra.mxu0 0.0
        %661 = vmatprep.subr.mxu0 0.0
        %662 = vmatpush1.msra.mxu0 0.0
        %663 = vmatprep.subr.mxu0 0.0
        %664 = vmatpush1.msra.mxu0 0.0
        %665 = vmatprep.subr.mxu0 0.0
        %666 = vmatpush1.msra.mxu0 0.0
        %667 = vmatprep.subr.mxu0 0.0
        %668 = vmatpush1.msra.mxu0 0.0
        %669 = vmatprep.subr.mxu0 0.0
        %670 = vmatpush1.msra.mxu0 0.0
        %671 = vmatprep.subr.mxu0 0.0
        %672 = vmatpush1.msra.mxu0 0.0
        %673 = vmatprep.subr.mxu0 0.0
        %674 = vmatpush1.msra.mxu0 %v645
        %675 = vmatprep.subr.mxu0 0.0
        %676 = vmatpush1.msra.mxu0 %v644
        %677 = vmatprep.subr.mxu0 0.0
        %678 = vmatpush1.msra.mxu0 %v643
        %679 = vmatprep.subr.mxu0 0.0
        %680 = vmatpush1.msra.mxu0 %v642
        %681 = vmatprep.subr.mxu0 0.0
        %682 = vmatpush2.msra.mxu0 0.0
        %683 = vmatprep.subr.mxu0 0.0
        %684 = vmatpush2.msra.mxu0 0.0
        %685 = vmatprep.subr.mxu0 0.0
        %686 = vmatpush2.msra.mxu0 0.0
        %687 = vmatprep.subr.mxu0 0.0
        %688 = vmatpush2.msra.mxu0 0.0
        %689 = vmatprep.subr.mxu0 0.0
        %690 = vmatpush2.msra.mxu0 0.0
        %691 = vmatprep.subr.mxu0 0.0
        %692 = vmatpush2.msra.mxu0 0.0
        %693 = vmatprep.subr.mxu0 0.0
        %694 = vmatpush2.msra.mxu0 0.0
        %695 = vmatprep.subr.mxu0 0.0
        %696 = vmatpush2.msra.mxu0 0.0
        %697 = vmatprep.subr.mxu0 0.0
        %698 = vmatpush2.msra.mxu0 0.0
        %699 = vmatprep.subr.mxu0 0.0
        %700 = vmatpush2.msra.mxu0 0.0
        %701 = vmatprep.subr.mxu0 0.0
        %702 = vmatpush2.msra.mxu0 0.0
        %703 = vmatprep.subr.mxu0 0.0
        %704 = vmatpush2.msra.mxu0 0.0
        %705 = vmatprep.subr.mxu0 0.0
        %706 = vmatpush2.msra.mxu0 0.0
        %707 = vmatprep.subr.mxu0 0.0
        %708 = vmatpush2.msra.mxu0 0.0
        %709 = vmatprep.subr.mxu0 0.0
        %710 = vmatpush2.msra.mxu0 0.0
        %711 = vmatprep.subr.mxu0 0.0
        %712 = vmatpush2.msra.mxu0 0.0
        %713 = vmatprep.mubr.f32.mxu0 0.0
        %714 = vmatmul.mubr.f32.gmra.mxu0 %v647
        %v715 = vpop.f32.mrf.mxu0
        %v716 = vadd.f32 0.0, %v715
        %v717 = vpop.f32.mrf.mxu0
        %718 = vdwg.mxu0
        %719 = vst [vmem:[%s480] sm:$0xff] %v716
        %s720 = sand.u32 %s203, 1
        %s721 = scalar_lea.sflag [#allocation4], %s720
        %s722 = sand.u32 %s203, 1
        %s723 = smul.addr %s722, 8
        %s724 = scalar_lea.vmem [#allocation13], %s723
        %s725 = sand.u32 %s34, 1
        %s726 = scalar_lea.sflag [#allocation15], %s725
        %s727 = sand.u32 %s231, 1
        %s728 = smul.addr %s727, 8
        %s729 = scalar_lea.vmem [#allocation14], %s728
        %s730 = sand.u32 %s34, 1
        %s731 = scalar_lea.sflag [#allocation15], %s730
        %s732 = sand.u32 %s259, 1
        %s733 = smul.addr %s732, 8
        %s734 = scalar_lea.vmem [#allocation16], %s733
        // Predicated region
        $region69: #{tpu_custom_call.1} parent=43 // pred_check
          %p735 = pneg %p213
        $region70: #{tpu_custom_call.1} parent=43 // pred_check_branch
          %737 = sbr.rel (%p735) target = $region72
        $region71: #{tpu_custom_call.1} parent=43 // pred_region
          %s739 = ssub.s32 128, 128
          %740 = vsyncadd %s721, %s739
          %s741 = sadd.s32 %s39, %s38
          %s742 = smul.addr %s741, 128
          %s743 = scalar_lea.hbm %s6, %s742
          %s745 = sshll.u32 %s724, 4
          %s746 = int_to_ptr.vmem [resolvable:$true] %s745
          %748 = dma.vmem_to_hbm [thread:$0]  %s746, 128, %s743, %s721
        $region72: #{tpu_custom_call.1} parent=43 // pred_fallthru
          _
        // Predicated region
        $region73: #{tpu_custom_call.1} parent=43 // pred_check
          %p749 = pneg %p241
        $region74: #{tpu_custom_call.1} parent=43 // pred_check_branch
          %751 = sbr.rel (%p749) target = $region76
        $region75: #{tpu_custom_call.1} parent=43 // pred_region
          %s753 = ssub.s32 128, 128
          %754 = vsyncadd %s726, %s753
          %s755 = sadd.s32 %s39, %s38
          %s756 = smul.addr %s755, 128
          %s757 = scalar_lea.hbm %s7, %s756
          %s759 = sshll.u32 %s729, 4
          %s760 = int_to_ptr.vmem [resolvable:$true] %s759
          %762 = dma.vmem_to_hbm [thread:$0]  %s760, 128, %s757, %s726
        $region76: #{tpu_custom_call.1} parent=43 // pred_fallthru
          _
        // Predicated region
        $region77: #{tpu_custom_call.1} parent=43 // pred_check
          %p763 = pneg %p269
        $region78: #{tpu_custom_call.1} parent=43 // pred_check_branch
          %765 = sbr.rel (%p763) target = $region80
        $region79: #{tpu_custom_call.1} parent=43 // pred_region
          %s767 = ssub.s32 128, 128
          %768 = vsyncadd %s731, %s767
          %s769 = sadd.s32 %s39, %s38
          %s770 = smul.addr %s769, 128
          %s771 = scalar_lea.hbm %s8, %s770
          %s773 = sshll.u32 %s734, 4
          %s774 = int_to_ptr.vmem [resolvable:$true] %s773
          %776 = dma.vmem_to_hbm [thread:$0]  %s774, 128, %s771, %s731
        $region80: #{tpu_custom_call.1} parent=43 // pred_fallthru
          _
      $region44: #{tpu_custom_call.1} parent=5 // pred_fallthru
        _
      %p777 = scmp.le.s32.totalorder 2, %s29
      // Predicated region
      $region81: #{tpu_custom_call.1} parent=5 // pred_check
        %p778 = pneg %p777
      $region82: #{tpu_custom_call.1} parent=5 // pred_check_branch
        %780 = sbr.rel (%p778) target = $region84
      $region83: #{tpu_custom_call.1} parent=5 // pred_region
        %s781 = ssub.s32 %s29, 2
        // Predicated region
        $region85: #{tpu_custom_call.1} parent=83 // pred_check
          %p782 = pneg %p219
        $region86: #{tpu_custom_call.1} parent=83 // pred_check_branch
          %784 = sbr.rel (%p782) target = $region88
        $region87: #{tpu_custom_call.1} parent=83 // pred_region
          %s785 = sand.u32 %s204, 1
          %s786 = scalar_lea.sflag [#allocation4], %s785
          %s787 = sand.u32 %s204, 1
          %s788 = smul.addr %s787, 8
          %s789 = scalar_lea.vmem [#allocation13], %s788
          %790 = dma.done %s786, 128
        $region88: #{tpu_custom_call.1} parent=83 // pred_fallthru
          _
        // Predicated region
        $region89: #{tpu_custom_call.1} parent=83 // pred_check
          %p791 = pneg %p247
        $region90: #{tpu_custom_call.1} parent=83 // pred_check_branch
          %793 = sbr.rel (%p791) target = $region92
        $region91: #{tpu_custom_call.1} parent=83 // pred_region
          %s794 = sand.u32 %s35, 1
          %s795 = scalar_lea.sflag [#allocation15], %s794
          %s796 = sand.u32 %s232, 1
          %s797 = smul.addr %s796, 8
          %s798 = scalar_lea.vmem [#allocation14], %s797
          %799 = dma.done %s795, 128
        $region92: #{tpu_custom_call.1} parent=83 // pred_fallthru
          _
        // Predicated region
        $region93: #{tpu_custom_call.1} parent=83 // pred_check
          %p800 = pneg %p275
        $region94: #{tpu_custom_call.1} parent=83 // pred_check_branch
          %802 = sbr.rel (%p800) target = $region96
        $region95: #{tpu_custom_call.1} parent=83 // pred_region
          %s803 = sand.u32 %s35, 1
          %s804 = scalar_lea.sflag [#allocation15], %s803
          %s805 = sand.u32 %s260, 1
          %s806 = smul.addr %s805, 8
          %s807 = scalar_lea.vmem [#allocation16], %s806
          %808 = dma.done %s804, 128
        $region96: #{tpu_custom_call.1} parent=83 // pred_fallthru
          _
      $region84: #{tpu_custom_call.1} parent=5 // pred_fallthru
        _
    $region6: #{tpu_custom_call.1} parent=1 // loop_footer
      %s33 = sadd.s32 1, %s29
    $region7: #{tpu_custom_call.1} parent=1 // loop_footer_branch
      %28 = sbr.rel target = $region3
    $region8: #{tpu_custom_call.1} parent=1 // loop_exit
      _
    %809 = vsyncpa [#allocation3], 1
    %s810 = scalar_lea.sflag [#allocation3], 1
    %811 = vsyncpa %s810, 1
    %812 = vsyncpa [#allocation6], 1
    %s813 = scalar_lea.sflag [#allocation6], 1
    %814 = vsyncpa %s813, 1
    %815 = vsyncpa [#allocation9], 1
    %816 = vsyncpa [#allocation12], 1
    %817 = vsyncpa [#allocation4], 1
    %s818 = scalar_lea.sflag [#allocation4], 1
    %819 = vsyncpa %s818, 1
    %820 = vsyncpa [#allocation15], 1
    %s821 = scalar_lea.sflag [#allocation15], 1
    %822 = vsyncpa %s821, 1

</llo_original>
